<compile_context>
chip_gen: v5e
topology: v5e:2x2
jax: 0.10.0
libtpu: 0.0.40
codegen_flags: <defaults>
</compile_context>

<pallas_src>
import jax
import jax.numpy as jnp
from jax.experimental import pallas as pl
from jax.experimental.pallas import tpu as pltpu

HID = 10            # hidden width used throughout netw
K_TILE_MAX = 2048   # max lane-width of a streamed A tile


def _round_up(x, m):
    return (x + m - 1) // m * m


def _pow2_floor(v):
    v = max(int(v), 1)
    return 1 << (v.bit_length() - 1)


def _vmem_capacity_bytes():
    # Per-generation VMEM capacity (v5e/v6e: 128 MiB, v7x: 64 MiB per TC).
    try:
        cap = getattr(pltpu.get_tpu_info(), "vmem_capacity_bytes", None)
        if cap:
            return int(cap)
    except Exception:
        pass
    return 64 * 1024 * 1024  # conservative default (v7x per-TensorCore)


# ---------------------------------------------------------------------------
# Fused kernel: A resident in VMEM, all layers back-to-back (small/medium N).
# ---------------------------------------------------------------------------

def fused_kernel(a_ref, z_ref, deg_ref, wf_ref, bf_ref, w2_ref, b2_ref,
                 w3_ref, b3_ref, wlin_ref, blin_ref, o_ref):
    f32 = jnp.float32
    a = a_ref[...].astype(f32)            # exact: small integer edge counts
    deg = deg_ref[...]
    # x = relu(convz1(node_encz1(z)))   [add aggr; encoder folded into convz1]
    h = jnp.dot(a, z_ref[...], preferred_element_type=f32)
    h = jnp.dot(h, wf_ref[...], preferred_element_type=f32) + deg * bf_ref[...]
    h = jnp.maximum(h, 0.0)
    # x = convz2(x)                     [add aggr, no activation]
    h = jnp.dot(jnp.dot(a, h, preferred_element_type=f32), w2_ref[...],
                preferred_element_type=f32) + deg * b2_ref[...]
    # x = relu(convxz1(x))              [mean aggr]
    h = jnp.dot(jnp.dot(a, h, preferred_element_type=f32), w3_ref[...],
                preferred_element_type=f32) + deg * b3_ref[...]
    dinv = jnp.where(deg > 0.0,
                     pl.reciprocal(jnp.maximum(deg, 1.0), approx=True), 0.0)
    h = jnp.maximum(dinv * h, 0.0)
    # x = softmax(lin(x), dim=1)   (row-wise; commutes with pickable gather)
    logits = jnp.dot(h, wlin_ref[...], preferred_element_type=f32) + blin_ref[...]
    m = jnp.max(logits, axis=1, keepdims=True)
    e = jnp.exp(logits - m)
    o_ref[...] = e * pl.reciprocal(jnp.sum(e, axis=1, keepdims=True), approx=True)


# ---------------------------------------------------------------------------
# Streamed kernels: 2-D grid (row tiles x K tiles) + f32 accumulator scratch.
# ---------------------------------------------------------------------------

def _accum_step(a_ref, x_ref, acc_ref):
    @pl.when(pl.program_id(1) == 0)
    def _():
        acc_ref[...] = jnp.zeros_like(acc_ref)
    acc_ref[...] += jnp.dot(a_ref[...].astype(jnp.float32), x_ref[...],
                            preferred_element_type=jnp.float32)


def conv1_stream_kernel(a_ref, z_ref, deg_ref, wf_ref, bf_ref, o_ref, acc_ref):
    # relu((A @ z) @ Wf + deg * bf)   -- add aggr, encoder fused into convz1
    _accum_step(a_ref, z_ref, acc_ref)

    @pl.when(pl.program_id(1) == pl.num_programs(1) - 1)
    def _():
        h = jnp.dot(acc_ref[...], wf_ref[...],
                    preferred_element_type=jnp.float32) \
            + deg_ref[...] * bf_ref[...]
        o_ref[...] = jnp.maximum(h, 0.0).astype(o_ref.dtype)


def conv2_stream_kernel(a_ref, x_ref, deg_ref, w_ref, b_ref, o_ref, acc_ref):
    # (A @ x) @ W2 + deg * b2         -- add aggr, no activation
    _accum_step(a_ref, x_ref, acc_ref)

    @pl.when(pl.program_id(1) == pl.num_programs(1) - 1)
    def _():
        h = jnp.dot(acc_ref[...], w_ref[...],
                    preferred_element_type=jnp.float32) \
            + deg_ref[...] * b_ref[...]
        o_ref[...] = h.astype(o_ref.dtype)


def conv3_head_stream_kernel(a_ref, x_ref, deg_ref, w3_ref, b3_ref,
                             wlin_ref, blin_ref, o_ref, acc_ref):
    # dinv*((A @ x) @ W3 + deg*b3) -> relu -> lin -> softmax
    _accum_step(a_ref, x_ref, acc_ref)

    @pl.when(pl.program_id(1) == pl.num_programs(1) - 1)
    def _():
        f32 = jnp.float32
        deg = deg_ref[...]
        h = jnp.dot(acc_ref[...], w3_ref[...], preferred_element_type=f32) \
            + deg * b3_ref[...]
        dinv = jnp.where(deg > 0.0,
                         pl.reciprocal(jnp.maximum(deg, 1.0), approx=True), 0.0)
        h = jnp.maximum(dinv * h, 0.0)
        logits = jnp.dot(h, wlin_ref[...], preferred_element_type=f32) \
            + blin_ref[...]
        m = jnp.max(logits, axis=1, keepdims=True)
        e = jnp.exp(logits - m)
        o_ref[...] = (e * pl.reciprocal(jnp.sum(e, axis=1, keepdims=True),
                                        approx=True)).astype(o_ref.dtype)


# ---------------------------------------------------------------------------
# pallas_call wrappers
# ---------------------------------------------------------------------------

def _fused_call(args, out_dim, vmem_limit):
    n_pad = args[0].shape[0]
    in_specs = [pl.BlockSpec(a.shape, lambda i: (0, 0)) for a in args]
    return pl.pallas_call(
        fused_kernel,
        out_shape=jax.ShapeDtypeStruct((n_pad, out_dim), jnp.float32),
        grid=(1,),
        in_specs=in_specs,
        out_specs=pl.BlockSpec((n_pad, out_dim), lambda i: (0, 0)),
        compiler_params=pltpu.CompilerParams(vmem_limit_bytes=vmem_limit),
    )(*args)


def _stream_layer(kernel, a_bf16, x_full, deg, consts, out_f, n_pad, tm, tk,
                  vmem_limit):
    """One layer: A streams as (tm, tk) bf16 blocks (auto double-buffered),
    rows 'parallel' (v7x megacore), K 'arbitrary' innermost accumulating A @ x
    into a f32 VMEM scratch; the tiny weights stay resident."""
    f_in = x_full.shape[1]
    grid = (n_pad // tm, n_pad // tk)
    in_specs = [
        pl.BlockSpec((tm, tk), lambda i, k: (i, k)),     # A row/col tile
        pl.BlockSpec((tk, f_in), lambda i, k: (k, 0)),   # features, K slab
        pl.BlockSpec((tm, 1), lambda i, k: (i, 0)),      # in-degree rows
    ] + [pl.BlockSpec(c.shape, lambda i, k: (0, 0)) for c in consts]
    return pl.pallas_call(
        kernel,
        out_shape=jax.ShapeDtypeStruct((n_pad, out_f), jnp.float32),
        grid=grid,
        in_specs=in_specs,
        out_specs=pl.BlockSpec((tm, out_f), lambda i, k: (i, 0)),
        scratch_shapes=[pltpu.VMEM((tm, f_in), jnp.float32)],
        compiler_params=pltpu.CompilerParams(
            dimension_semantics=("parallel", "arbitrary"),
            vmem_limit_bytes=vmem_limit),
    )(a_bf16, x_full, deg, *consts)


def _stream_config(n, vmem_limit, tm=None, tk=None):
    n_pad = _round_up(max(n, 16), 512)
    if tk is None:
        tk = min(n_pad, K_TILE_MAX)
    assert tk % 128 == 0, "tk must be a multiple of 128 (lane width)"
    n_pad = _round_up(n_pad, tk)
    if tm is None:
        # double-buffered bf16 A tile + its in-kernel f32 upcast ~ 8*tm*tk B
        budget = max(vmem_limit // 4, 2 * 1024 * 1024)
        tm = min(512, max(16, _pow2_floor(budget // (8 * tk))))
    assert tm % 16 == 0, "tm must be a multiple of 16 (bf16 sublane packing)"
    if n_pad // tm < 2:
        # >= 2 independent row tiles so both v7x TensorCores get work.
        tm = max(16, _pow2_floor(n_pad // 2))
    n_pad = _round_up(n_pad, tm)
    assert n_pad % tm == 0 and n_pad % tk == 0, "tm/tk must tile padded N"
    return n_pad, tm, tk


# ---------------------------------------------------------------------------
# Parameters + forward
# ---------------------------------------------------------------------------

def init_params(key, zf, out):
    ks = jax.random.split(key, 10)

    def lin(kw, kb, fan_in, fan_out):
        # torch.nn.Linear default init: U(-1/sqrt(fan_in), 1/sqrt(fan_in))
        bound = 1.0 / jnp.sqrt(jnp.float32(fan_in))
        w = jax.random.uniform(kw, (fan_in, fan_out), jnp.float32, -bound, bound)
        b = jax.random.uniform(kb, (1, fan_out), jnp.float32, -bound, bound)
        return w, b

    wenc, benc = lin(ks[0], ks[1], zf, HID)     # node_encz1
    w1, b1 = lin(ks[2], ks[3], HID, HID)        # convz1.lin
    w2, b2 = lin(ks[4], ks[5], HID, HID)        # convz2.lin
    w3, b3 = lin(ks[6], ks[7], HID, HID)        # convxz1.lin
    wlin, blin = lin(ks[8], ks[9], HID, out)    # lin
    return dict(wenc=wenc, benc=benc, w1=w1, b1=b1, w2=w2, b2=b2,
                w3=w3, b3=b3, wlin=wlin, blin=blin)


def netw_forward(params, x, z, edge_index, z1edge_index, z2edge_index,
                 z3edge_index, edge_attr, pickable, *,
                 tm=None, tk=None, force_streamed=False):
    # Only z, z1edge_index and pickable are consumed by the reference forward.
    del x, edge_index, z2edge_index, z3edge_index, edge_attr
    n, zf = z.shape
    out_dim = params["wlin"].shape[1]

    cap = _vmem_capacity_bytes()
    vmem_limit = int(min(3 * cap // 4, 100 * 1024 * 1024))

    # Fold node_encz1 into convz1's linear (no nonlinearity in between).
    wf = jnp.dot(params["wenc"], params["w1"])                  # (zf, HID)
    bf = jnp.dot(params["benc"], params["w1"]) + params["b1"]   # (1, HID)

    src = z1edge_index[0]
    dst = z1edge_index[1]

    # Resident-A fused path whenever bf16 A (double-buffered) plus its
    # in-kernel f32 upcast fits comfortably; otherwise stream (tm, tk) tiles.
    n_pad_f = _round_up(max(n, 16), 128)
    use_fused = (not force_streamed and tm is None and tk is None
                 and 8 * n_pad_f * n_pad_f <= vmem_limit // 2)
    if use_fused:
        n_pad = n_pad_f
    else:
        n_pad, tm, tk = _stream_config(n, vmem_limit, tm, tk)

    # ---- glue (plain JAX scatter): bf16 adjacency + f32 in-degree ----------
    # A[dst, src] += 1 (source_to_target flow); built directly in bf16 (edge
    # multiplicities <= 256 stay exact), deg from an edge scatter-add — no f32
    # dense matrix, no row-sum over A, no cast.
    ones = jnp.ones(dst.shape, jnp.bfloat16)
    a_bf16 = jnp.zeros((n_pad, n_pad), jnp.bfloat16).at[dst, src].add(ones)
    deg = jnp.zeros((n_pad,), jnp.float32).at[dst].add(1.0).reshape(n_pad, 1)
    z_pad = jnp.zeros((n_pad, zf), jnp.float32).at[:n].set(z.astype(jnp.float32))

    if use_fused:
        y = _fused_call((a_bf16, z_pad, deg, wf, bf,
                         params["w2"], params["b2"],
                         params["w3"], params["b3"],
                         params["wlin"], params["blin"]), out_dim, vmem_limit)
    else:
        x1 = _stream_layer(conv1_stream_kernel, a_bf16, z_pad, deg,
                           [wf, bf], HID, n_pad, tm, tk, vmem_limit)
        x2 = _stream_layer(conv2_stream_kernel, a_bf16, x1, deg,
                           [params["w2"], params["b2"]], HID,
                           n_pad, tm, tk, vmem_limit)
        y = _stream_layer(conv3_head_stream_kernel, a_bf16, x2, deg,
                          [params["w3"], params["b3"],
                           params["wlin"], params["blin"]], out_dim,
                          n_pad, tm, tk, vmem_limit)

    # x = x[pickable] (row gather; row-wise softmax commutes with it) — glue.
    return y[:n][pickable]


if __name__ == "__main__":
    key = jax.random.PRNGKey(0)
    k_param, k_z, k_x, k_edge, k_attr, k_z2, k_e2 = jax.random.split(key, 7)

    ZF = 4          # per-node input features for z
    OUT = 3         # output classes
    N, E = 16, 40   # small graph

    params = init_params(k_param, ZF, OUT)

    z = jax.random.normal(k_z, (N, ZF), jnp.float32)
    x_unused = jax.random.normal(k_x, (N, HID), jnp.float32)
    z1edge_index = jax.random.randint(k_edge, (2, E), 0, N, jnp.int32)
    edge_attr = jax.random.normal(k_attr, (E, 1), jnp.float32)
    pickable = jnp.array([0, 3, 5, 7, 11, 13], jnp.int32)

    out = netw_forward(params, x_unused, z, z1edge_index, z1edge_index,
                       z1edge_index, z1edge_index, edge_attr, pickable)
    out = jax.block_until_ready(out)
    assert out.shape == (pickable.shape[0], OUT)
    assert bool(jnp.all(jnp.isfinite(out)))
    # each picked row is a softmax distribution (approx reciprocal -> loose tol)
    assert bool(jnp.allclose(jnp.sum(out, axis=1), 1.0, atol=5e-3))

    # Larger graph: check the fused resident-A path against the streamed
    # 2-D (rows x K) tiled path (both grid axes > 1) and the auto-sized
    # streamed path.
    N2, E2 = 200, 600
    z2 = jax.random.normal(k_z2, (N2, ZF), jnp.float32)
    e2 = jax.random.randint(k_e2, (2, E2), 0, N2, jnp.int32)
    ea2 = jnp.zeros((E2, 1), jnp.float32)
    pick2 = jnp.arange(0, N2, 7, dtype=jnp.int32)

    ref2 = netw_forward(params, None, z2, e2, e2, e2, e2, ea2, pick2)
    str2 = netw_forward(params, None, z2, e2, e2, e2, e2, ea2, pick2,
                        tm=64, tk=128)           # grid (8, 4): rows x K
    str3 = netw_forward(params, None, z2, e2, e2, e2, e2, ea2, pick2,
                        force_streamed=True)     # auto-sized streamed tiles
    ref2, str2, str3 = jax.block_until_ready((ref2, str2, str3))
    assert ref2.shape == (pick2.shape[0], OUT)
    assert bool(jnp.allclose(ref2, str2, atol=1e-3, rtol=1e-3))
    assert bool(jnp.allclose(ref2, str3, atol=1e-3, rtol=1e-3))

    print("KERNEL_OK")
</pallas_src>

<mosaic_0001>
module attributes {stable_mosaic.version = 11 : i64} {
  func.func @fused_kernel(%arg0: i32, %arg1: memref<128x128xbf16, #tpu.memory_space<vmem>>, %arg2: memref<128x4xf32, #tpu.memory_space<vmem>>, %arg3: memref<128x1xf32, #tpu.memory_space<vmem>>, %arg4: memref<4x10xf32, #tpu.memory_space<vmem>>, %arg5: memref<1x10xf32, #tpu.memory_space<vmem>>, %arg6: memref<10x10xf32, #tpu.memory_space<vmem>>, %arg7: memref<1x10xf32, #tpu.memory_space<vmem>>, %arg8: memref<10x10xf32, #tpu.memory_space<vmem>>, %arg9: memref<1x10xf32, #tpu.memory_space<vmem>>, %arg10: memref<10x3xf32, #tpu.memory_space<vmem>>, %arg11: memref<1x3xf32, #tpu.memory_space<vmem>>, %arg12: memref<128x3xf32, #tpu.memory_space<vmem>>) attributes {dimension_semantics = [#tpu.dimension_semantics<arbitrary>], iteration_bounds = array<i64: 1>, scalar_prefetch = 0 : i64, scratch_operands = 0 : i64, tpu.core_type = #tpu.core_type<tc>, window_params = [{pipeline_mode = #tpu.pipeline_mode<synchronous>, transform_indices = @transform_0, window_bounds = array<i64: 128, 128>}, {pipeline_mode = #tpu.pipeline_mode<synchronous>, transform_indices = @transform_1, window_bounds = array<i64: 128, 4>}, {pipeline_mode = #tpu.pipeline_mode<synchronous>, transform_indices = @transform_2, window_bounds = array<i64: 128, 1>}, {pipeline_mode = #tpu.pipeline_mode<synchronous>, transform_indices = @transform_3, window_bounds = array<i64: 4, 10>}, {pipeline_mode = #tpu.pipeline_mode<synchronous>, transform_indices = @transform_4, window_bounds = array<i64: 1, 10>}, {pipeline_mode = #tpu.pipeline_mode<synchronous>, transform_indices = @transform_5, window_bounds = array<i64: 10, 10>}, {pipeline_mode = #tpu.pipeline_mode<synchronous>, transform_indices = @transform_6, window_bounds = array<i64: 1, 10>}, {pipeline_mode = #tpu.pipeline_mode<synchronous>, transform_indices = @transform_7, window_bounds = array<i64: 10, 10>}, {pipeline_mode = #tpu.pipeline_mode<synchronous>, transform_indices = @transform_8, window_bounds = array<i64: 1, 10>}, {pipeline_mode = #tpu.pipeline_mode<synchronous>, transform_indices = @transform_9, window_bounds = array<i64: 10, 3>}, {pipeline_mode = #tpu.pipeline_mode<synchronous>, transform_indices = @transform_10, window_bounds = array<i64: 1, 3>}, {pipeline_mode = #tpu.pipeline_mode<synchronous>, transform_indices = @transform_11, window_bounds = array<i64: 128, 3>}]} {
    %c0 = arith.constant 0 : index
    %c0_0 = arith.constant 0 : index
    %0 = vector.load %arg1[%c0, %c0_0] : memref<128x128xbf16, #tpu.memory_space<vmem>>, vector<128x128xbf16>
    %1 = arith.extf %0 : vector<128x128xbf16> to vector<128x128xf32>
    %c0_1 = arith.constant 0 : index
    %c0_2 = arith.constant 0 : index
    %2 = vector.load %arg3[%c0_1, %c0_2] : memref<128x1xf32, #tpu.memory_space<vmem>>, vector<128x1xf32>
    %c0_3 = arith.constant 0 : index
    %c0_4 = arith.constant 0 : index
    %3 = vector.load %arg2[%c0_3, %c0_4] : memref<128x4xf32, #tpu.memory_space<vmem>>, vector<128x4xf32>
    %cst = arith.constant dense<0.000000e+00> : vector<128x4xf32>
    %4 = tpu.matmul %1, %3, %cst {dimension_numbers = #tpu.dot_dimension_numbers<[1], [0], [0], [1], [0, 0, 1, 1], [], []>} : vector<128x128xf32>, vector<128x4xf32>, vector<128x4xf32> -> vector<128x4xf32>
    %c0_5 = arith.constant 0 : index
    %c0_6 = arith.constant 0 : index
    %5 = vector.load %arg4[%c0_5, %c0_6] : memref<4x10xf32, #tpu.memory_space<vmem>>, vector<4x10xf32>
    %cst_7 = arith.constant dense<0.000000e+00> : vector<128x10xf32>
    %6 = tpu.matmul %4, %5, %cst_7 {dimension_numbers = #tpu.dot_dimension_numbers<[1], [0], [0], [1], [0, 0, 1, 1], [], []>} : vector<128x4xf32>, vector<4x10xf32>, vector<128x10xf32> -> vector<128x10xf32>
    %c0_8 = arith.constant 0 : index
    %c0_9 = arith.constant 0 : index
    %7 = vector.load %arg5[%c0_8, %c0_9] : memref<1x10xf32, #tpu.memory_space<vmem>>, vector<1x10xf32>
    %8 = vector.broadcast %2 : vector<128x1xf32> to vector<128x10xf32>
    %9 = vector.broadcast %7 : vector<1x10xf32> to vector<128x10xf32>
    %10 = arith.mulf %8, %9 : vector<128x10xf32>
    %11 = arith.addf %6, %10 : vector<128x10xf32>
    %cst_10 = arith.constant 0.000000e+00 : f32
    %12 = vector.broadcast %cst_10 : f32 to vector<128x10xf32>
    %13 = arith.maximumf %11, %12 : vector<128x10xf32>
    %cst_11 = arith.constant dense<0.000000e+00> : vector<128x10xf32>
    %14 = tpu.matmul %1, %13, %cst_11 {dimension_numbers = #tpu.dot_dimension_numbers<[1], [0], [0], [1], [0, 0, 1, 1], [], []>} : vector<128x128xf32>, vector<128x10xf32>, vector<128x10xf32> -> vector<128x10xf32>
    %c0_12 = arith.constant 0 : index
    %c0_13 = arith.constant 0 : index
    %15 = vector.load %arg6[%c0_12, %c0_13] : memref<10x10xf32, #tpu.memory_space<vmem>>, vector<10x10xf32>
    %cst_14 = arith.constant dense<0.000000e+00> : vector<128x10xf32>
    %16 = tpu.matmul %14, %15, %cst_14 {dimension_numbers = #tpu.dot_dimension_numbers<[1], [0], [0], [1], [0, 0, 1, 1], [], []>} : vector<128x10xf32>, vector<10x10xf32>, vector<128x10xf32> -> vector<128x10xf32>
    %c0_15 = arith.constant 0 : index
    %c0_16 = arith.constant 0 : index
    %17 = vector.load %arg7[%c0_15, %c0_16] : memref<1x10xf32, #tpu.memory_space<vmem>>, vector<1x10xf32>
    %18 = vector.broadcast %2 : vector<128x1xf32> to vector<128x10xf32>
    %19 = vector.broadcast %17 : vector<1x10xf32> to vector<128x10xf32>
    %20 = arith.mulf %18, %19 : vector<128x10xf32>
    %21 = arith.addf %16, %20 : vector<128x10xf32>
    %cst_17 = arith.constant dense<0.000000e+00> : vector<128x10xf32>
    %22 = tpu.matmul %1, %21, %cst_17 {dimension_numbers = #tpu.dot_dimension_numbers<[1], [0], [0], [1], [0, 0, 1, 1], [], []>} : vector<128x128xf32>, vector<128x10xf32>, vector<128x10xf32> -> vector<128x10xf32>
    %c0_18 = arith.constant 0 : index
    %c0_19 = arith.constant 0 : index
    %23 = vector.load %arg8[%c0_18, %c0_19] : memref<10x10xf32, #tpu.memory_space<vmem>>, vector<10x10xf32>
    %cst_20 = arith.constant dense<0.000000e+00> : vector<128x10xf32>
    %24 = tpu.matmul %22, %23, %cst_20 {dimension_numbers = #tpu.dot_dimension_numbers<[1], [0], [0], [1], [0, 0, 1, 1], [], []>} : vector<128x10xf32>, vector<10x10xf32>, vector<128x10xf32> -> vector<128x10xf32>
    %c0_21 = arith.constant 0 : index
    %c0_22 = arith.constant 0 : index
    %25 = vector.load %arg9[%c0_21, %c0_22] : memref<1x10xf32, #tpu.memory_space<vmem>>, vector<1x10xf32>
    %26 = vector.broadcast %2 : vector<128x1xf32> to vector<128x10xf32>
    %27 = vector.broadcast %25 : vector<1x10xf32> to vector<128x10xf32>
    %28 = arith.mulf %26, %27 : vector<128x10xf32>
    %29 = arith.addf %24, %28 : vector<128x10xf32>
    %cst_23 = arith.constant 0.000000e+00 : f32
    %30 = vector.broadcast %cst_23 : f32 to vector<128x1xf32>
    %31 = arith.cmpf ogt, %2, %30 : vector<128x1xf32>
    %cst_24 = arith.constant 1.000000e+00 : f32
    %32 = vector.broadcast %cst_24 : f32 to vector<128x1xf32>
    %33 = arith.maximumf %2, %32 : vector<128x1xf32>
    %34 = tpu.reciprocal %33 {approx = true} : vector<128x1xf32> -> vector<128x1xf32>
    %cst_25 = arith.constant 0.000000e+00 : f32
    %35 = vector.broadcast %cst_25 : f32 to vector<128x1xf32>
    %36 = arith.select %31, %34, %35 : vector<128x1xi1>, vector<128x1xf32>
    %37 = vector.broadcast %36 : vector<128x1xf32> to vector<128x10xf32>
    %38 = arith.mulf %37, %29 : vector<128x10xf32>
    %cst_26 = arith.constant 0.000000e+00 : f32
    %39 = vector.broadcast %cst_26 : f32 to vector<128x10xf32>
    %40 = arith.maximumf %38, %39 : vector<128x10xf32>
    %c0_27 = arith.constant 0 : index
    %c0_28 = arith.constant 0 : index
    %41 = vector.load %arg10[%c0_27, %c0_28] : memref<10x3xf32, #tpu.memory_space<vmem>>, vector<10x3xf32>
    %cst_29 = arith.constant dense<0.000000e+00> : vector<128x3xf32>
    %42 = tpu.matmul %40, %41, %cst_29 {dimension_numbers = #tpu.dot_dimension_numbers<[1], [0], [0], [1], [0, 0, 1, 1], [], []>} : vector<128x10xf32>, vector<10x3xf32>, vector<128x3xf32> -> vector<128x3xf32>
    %c0_30 = arith.constant 0 : index
    %c0_31 = arith.constant 0 : index
    %43 = vector.load %arg11[%c0_30, %c0_31] : memref<1x3xf32, #tpu.memory_space<vmem>>, vector<1x3xf32>
    %44 = vector.broadcast %43 : vector<1x3xf32> to vector<128x3xf32>
    %45 = arith.addf %42, %44 : vector<128x3xf32>
    %cst_32 = arith.constant dense<0xFF800000> : vector<128xf32>
    %46 = vector.multi_reduction <maximumf>, %45, %cst_32 [1] : vector<128x3xf32> to vector<128xf32>
    %47 = vector.shape_cast %46 : vector<128xf32> to vector<128x1xf32>
    %48 = vector.broadcast %47 : vector<128x1xf32> to vector<128x3xf32>
    %49 = arith.subf %45, %48 : vector<128x3xf32>
    %50 = math.exp %49 : vector<128x3xf32>
    %cst_33 = arith.constant dense<0.000000e+00> : vector<128xf32>
    %51 = vector.multi_reduction <add>, %50, %cst_33 [1] : vector<128x3xf32> to vector<128xf32>
    %52 = vector.shape_cast %51 : vector<128xf32> to vector<128x1xf32>
    %53 = tpu.reciprocal %52 {approx = true} : vector<128x1xf32> -> vector<128x1xf32>
    %54 = vector.broadcast %53 : vector<128x1xf32> to vector<128x3xf32>
    %55 = arith.mulf %50, %54 : vector<128x3xf32>
    %c0_34 = arith.constant 0 : index
    %c0_35 = arith.constant 0 : index
    %56 = vector.load %arg12[%c0_34, %c0_35] : memref<128x3xf32, #tpu.memory_space<vmem>>, vector<128x3xf32>
    tpu.vector_store %arg12[%c0_34, %c0_35], %55 {strides = array<i32>} : memref<128x3xf32, #tpu.memory_space<vmem>>, vector<128x3xf32>,
    return
  }
  func.func @transform_0(%arg0: i32) -> (i32, i32) {
    %c0_i32 = arith.constant 0 : i32
    %c0_i32_0 = arith.constant 0 : i32
    %c0_i32_1 = arith.constant 0 : i32
    return %c0_i32, %c0_i32_0 : i32, i32
  }
  func.func @transform_1(%arg0: i32) -> (i32, i32) {
    %c0_i32 = arith.constant 0 : i32
    %c0_i32_0 = arith.constant 0 : i32
    %c0_i32_1 = arith.constant 0 : i32
    return %c0_i32, %c0_i32_0 : i32, i32
  }
  func.func @transform_2(%arg0: i32) -> (i32, i32) {
    %c0_i32 = arith.constant 0 : i32
    %c0_i32_0 = arith.constant 0 : i32
    %c0_i32_1 = arith.constant 0 : i32
    return %c0_i32, %c0_i32_0 : i32, i32
  }
  func.func @transform_3(%arg0: i32) -> (i32, i32) {
    %c0_i32 = arith.constant 0 : i32
    %c0_i32_0 = arith.constant 0 : i32
    %c0_i32_1 = arith.constant 0 : i32
    return %c0_i32, %c0_i32_0 : i32, i32
  }
  func.func @transform_4(%arg0: i32) -> (i32, i32) {
    %c0_i32 = arith.constant 0 : i32
    %c0_i32_0 = arith.constant 0 : i32
    %c0_i32_1 = arith.constant 0 : i32
    return %c0_i32, %c0_i32_0 : i32, i32
  }
  func.func @transform_5(%arg0: i32) -> (i32, i32) {
    %c0_i32 = arith.constant 0 : i32
    %c0_i32_0 = arith.constant 0 : i32
    %c0_i32_1 = arith.constant 0 : i32
    return %c0_i32, %c0_i32_0 : i32, i32
  }
  func.func @transform_6(%arg0: i32) -> (i32, i32) {
    %c0_i32 = arith.constant 0 : i32
    %c0_i32_0 = arith.constant 0 : i32
    %c0_i32_1 = arith.constant 0 : i32
    return %c0_i32, %c0_i32_0 : i32, i32
  }
  func.func @transform_7(%arg0: i32) -> (i32, i32) {
    %c0_i32 = arith.constant 0 : i32
    %c0_i32_0 = arith.constant 0 : i32
    %c0_i32_1 = arith.constant 0 : i32
    return %c0_i32, %c0_i32_0 : i32, i32
  }
  func.func @transform_8(%arg0: i32) -> (i32, i32) {
    %c0_i32 = arith.constant 0 : i32
    %c0_i32_0 = arith.constant 0 : i32
    %c0_i32_1 = arith.constant 0 : i32
    return %c0_i32, %c0_i32_0 : i32, i32
  }
  func.func @transform_9(%arg0: i32) -> (i32, i32) {
    %c0_i32 = arith.constant 0 : i32
    %c0_i32_0 = arith.constant 0 : i32
    %c0_i32_1 = arith.constant 0 : i32
    return %c0_i32, %c0_i32_0 : i32, i32
  }
  func.func @transform_10(%arg0: i32) -> (i32, i32) {
    %c0_i32 = arith.constant 0 : i32
    %c0_i32_0 = arith.constant 0 : i32
    %c0_i32_1 = arith.constant 0 : i32
    return %c0_i32, %c0_i32_0 : i32, i32
  }
  func.func @transform_11(%arg0: i32) -> (i32, i32) {
    %c0_i32 = arith.constant 0 : i32
    %c0_i32_0 = arith.constant 0 : i32
    %c0_i32_1 = arith.constant 0 : i32
    return %c0_i32, %c0_i32_0 : i32, i32
  }
}

</mosaic_0001>

<llo_original>
// kernel: tpu_custom_call.1
$region0: #{tpu_custom_call.1}
  #allocation0 [shape = 'u32[]', space=smem, size = 0x4, offset = 0x4, fixed_abs, tag = 'smem constant byte address 0x4 - core index']
  #allocation1 [shape = 'u32[72,128]{1,0:T(1,128)}', space=vmem, size = 0x9000, scoped, tag = 'internal scratch']
  %s0 = inlined_call_operand.vmem [shape: bf16[128,128], index: 0, kind: input, shape index: {}]
  %s1 = inlined_call_operand.vmem [shape: f32[128,4], index: 1, kind: input, shape index: {}]
  %s2 = inlined_call_operand.vmem [shape: f32[128,1], index: 2, kind: input, shape index: {}]
  %s3 = inlined_call_operand.vmem [shape: f32[4,10], index: 3, kind: input, shape index: {}]
  %s4 = inlined_call_operand.vmem [shape: f32[1,10], index: 4, kind: input, shape index: {}]
  %s5 = inlined_call_operand.vmem [shape: f32[10,10], index: 5, kind: input, shape index: {}]
  %s6 = inlined_call_operand.vmem [shape: f32[1,10], index: 6, kind: input, shape index: {}]
  %s7 = inlined_call_operand.vmem [shape: f32[10,10], index: 7, kind: input, shape index: {}]
  %s8 = inlined_call_operand.vmem [shape: f32[1,10], index: 8, kind: input, shape index: {}]
  %s9 = inlined_call_operand.vmem [shape: f32[10,3], index: 9, kind: input, shape index: {}]
  %s10 = inlined_call_operand.vmem [shape: f32[1,3], index: 10, kind: input, shape index: {}]
  %s11 = inlined_call_operand.vmem [shape: f32[128,3], index: 11, kind: output, shape index: {}]
  %s12 = sld [smem:[#allocation0]]
  $region54: #{tpu_custom_call.1} parent=0
    _
  %s14 = ssub.s32 1, %s12
  %s15 = scalar_select 0, %s14, %s12
  // Predicated region
  $region2: #{tpu_custom_call.1} parent=0 // pred_check
    _
  $region3: #{tpu_custom_call.1} parent=0 // pred_check_branch
    %17 = sbr.rel (0) target = $region5
  $region4: #{tpu_custom_call.1} parent=0 // pred_region
    _
  $region5: #{tpu_custom_call.1} parent=0 // pred_fallthru
    _
  // Predicated region
  $region6: #{tpu_custom_call.1} parent=0 // pred_check
    _
  $region7: #{tpu_custom_call.1} parent=0 // pred_check_branch
    %19 = sbr.rel (0) target = $region9
  $region8: #{tpu_custom_call.1} parent=0 // pred_region
    _
  $region9: #{tpu_custom_call.1} parent=0 // pred_fallthru
    _
  // Predicated region
  $region10: #{tpu_custom_call.1} parent=0 // pred_check
    _
  $region11: #{tpu_custom_call.1} parent=0 // pred_check_branch
    %21 = sbr.rel (0) target = $region13
  $region12: #{tpu_custom_call.1} parent=0 // pred_region
    _
  $region13: #{tpu_custom_call.1} parent=0 // pred_fallthru
    _
  // Predicated region
  $region14: #{tpu_custom_call.1} parent=0 // pred_check
    _
  $region15: #{tpu_custom_call.1} parent=0 // pred_check_branch
    %23 = sbr.rel (0) target = $region17
  $region16: #{tpu_custom_call.1} parent=0 // pred_region
    _
  $region17: #{tpu_custom_call.1} parent=0 // pred_fallthru
    _
  // Predicated region
  $region18: #{tpu_custom_call.1} parent=0 // pred_check
    _
  $region19: #{tpu_custom_call.1} parent=0 // pred_check_branch
    %25 = sbr.rel (0) target = $region21
  $region20: #{tpu_custom_call.1} parent=0 // pred_region
    _
  $region21: #{tpu_custom_call.1} parent=0 // pred_fallthru
    _
  // Predicated region
  $region22: #{tpu_custom_call.1} parent=0 // pred_check
    _
  $region23: #{tpu_custom_call.1} parent=0 // pred_check_branch
    %27 = sbr.rel (0) target = $region25
  $region24: #{tpu_custom_call.1} parent=0 // pred_region
    _
  $region25: #{tpu_custom_call.1} parent=0 // pred_fallthru
    _
  // Predicated region
  $region26: #{tpu_custom_call.1} parent=0 // pred_check
    _
  $region27: #{tpu_custom_call.1} parent=0 // pred_check_branch
    %29 = sbr.rel (0) target = $region29
  $region28: #{tpu_custom_call.1} parent=0 // pred_region
    _
  $region29: #{tpu_custom_call.1} parent=0 // pred_fallthru
    _
  // Predicated region
  $region30: #{tpu_custom_call.1} parent=0 // pred_check
    _
  $region31: #{tpu_custom_call.1} parent=0 // pred_check_branch
    %31 = sbr.rel (0) target = $region33
  $region32: #{tpu_custom_call.1} parent=0 // pred_region
    _
  $region33: #{tpu_custom_call.1} parent=0 // pred_fallthru
    _
  // Predicated region
  $region34: #{tpu_custom_call.1} parent=0 // pred_check
    _
  $region35: #{tpu_custom_call.1} parent=0 // pred_check_branch
    %33 = sbr.rel (0) target = $region37
  $region36: #{tpu_custom_call.1} parent=0 // pred_region
    _
  $region37: #{tpu_custom_call.1} parent=0 // pred_fallthru
    _
  // Predicated region
  $region38: #{tpu_custom_call.1} parent=0 // pred_check
    _
  $region39: #{tpu_custom_call.1} parent=0 // pred_check_branch
    %35 = sbr.rel (0) target = $region41
  $region40: #{tpu_custom_call.1} parent=0 // pred_region
    _
  $region41: #{tpu_custom_call.1} parent=0 // pred_fallthru
    _
  // Predicated region
  $region42: #{tpu_custom_call.1} parent=0 // pred_check
    _
  $region43: #{tpu_custom_call.1} parent=0 // pred_check_branch
    %37 = sbr.rel (0) target = $region45
  $region44: #{tpu_custom_call.1} parent=0 // pred_region
    _
  $region45: #{tpu_custom_call.1} parent=0 // pred_fallthru
    _
  %v38 = vld [vmem:[%s0] sm:$0xf]
  %v39 = vld [vmem:[%s0 + $0x4] sm:$0xf]
  %v40 = vld [vmem:[%s0 + $0x8] sm:$0xf]
  %v41 = vld [vmem:[%s0 + $0xc] sm:$0xf]
  %v42 = vld [vmem:[%s0 + $0x10] sm:$0xf]
  %v43 = vld [vmem:[%s0 + $0x14] sm:$0xf]
  %v44 = vld [vmem:[%s0 + $0x18] sm:$0xf]
  %v45 = vld [vmem:[%s0 + $0x1c] sm:$0xf]
  %v46 = vld [vmem:[%s0 + $0x20] sm:$0xf]
  %v47 = vld [vmem:[%s0 + $0x24] sm:$0xf]
  %v48 = vld [vmem:[%s0 + $0x28] sm:$0xf]
  %v49 = vld [vmem:[%s0 + $0x2c] sm:$0xf]
  %v50 = vld [vmem:[%s0 + $0x30] sm:$0xf]
  %v51 = vld [vmem:[%s0 + $0x34] sm:$0xf]
  %v52 = vld [vmem:[%s0 + $0x38] sm:$0xf]
  %v53 = vld [vmem:[%s0 + $0x3c] sm:$0xf]
  %v54 = vunpack.c.l.bf16 %v38
  %v55 = vunpack.c.l.bf16 %v39
  %v56 = vunpack.c.l.bf16 %v40
  %v57 = vunpack.c.l.bf16 %v41
  %v58 = vunpack.c.l.bf16 %v42
  %v59 = vunpack.c.l.bf16 %v43
  %v60 = vunpack.c.l.bf16 %v44
  %v61 = vunpack.c.l.bf16 %v45
  %v62 = vunpack.c.l.bf16 %v46
  %v63 = vunpack.c.l.bf16 %v47
  %v64 = vunpack.c.l.bf16 %v48
  %v65 = vunpack.c.l.bf16 %v49
  %v66 = vunpack.c.l.bf16 %v50
  %v67 = vunpack.c.l.bf16 %v51
  %v68 = vunpack.c.l.bf16 %v52
  %v69 = vunpack.c.l.bf16 %v53
  %v70 = vld [vmem:[%s2] sm:$0xff]
  %v71 = vld [vmem:[%s2 + $0x8] sm:$0xff]
  %v72 = vld [vmem:[%s2 + $0x10] sm:$0xff]
  %v73 = vld [vmem:[%s2 + $0x18] sm:$0xff]
  %v74 = vld [vmem:[%s2 + $0x20] sm:$0xff]
  %v75 = vld [vmem:[%s2 + $0x28] sm:$0xff]
  %v76 = vld [vmem:[%s2 + $0x30] sm:$0xff]
  %v77 = vld [vmem:[%s2 + $0x38] sm:$0xff]
  %v78 = vld [vmem:[%s2 + $0x40] sm:$0xff]
  %v79 = vld [vmem:[%s2 + $0x48] sm:$0xff]
  %v80 = vld [vmem:[%s2 + $0x50] sm:$0xff]
  %v81 = vld [vmem:[%s2 + $0x58] sm:$0xff]
  %v82 = vld [vmem:[%s2 + $0x60] sm:$0xff]
  %v83 = vld [vmem:[%s2 + $0x68] sm:$0xff]
  %v84 = vld [vmem:[%s2 + $0x70] sm:$0xff]
  %v85 = vld [vmem:[%s2 + $0x78] sm:$0xff]
  %v86 = vld [vmem:[%s1] sm:$0xff]
  %v87 = vld [vmem:[%s1 + $0x8] sm:$0xff]
  %v88 = vld [vmem:[%s1 + $0x10] sm:$0xff]
  %v89 = vld [vmem:[%s1 + $0x18] sm:$0xff]
  %v90 = vld [vmem:[%s1 + $0x20] sm:$0xff]
  %v91 = vld [vmem:[%s1 + $0x28] sm:$0xff]
  %v92 = vld [vmem:[%s1 + $0x30] sm:$0xff]
  %v93 = vld [vmem:[%s1 + $0x38] sm:$0xff]
  %v94 = vld [vmem:[%s1 + $0x40] sm:$0xff]
  %v95 = vld [vmem:[%s1 + $0x48] sm:$0xff]
  %v96 = vld [vmem:[%s1 + $0x50] sm:$0xff]
  %v97 = vld [vmem:[%s1 + $0x58] sm:$0xff]
  %v98 = vld [vmem:[%s1 + $0x60] sm:$0xff]
  %v99 = vld [vmem:[%s1 + $0x68] sm:$0xff]
  %v100 = vld [vmem:[%s1 + $0x70] sm:$0xff]
  %v101 = vld [vmem:[%s1 + $0x78] sm:$0xff]
  %102 = vmatpush.msra.mxu0 %v101
  %103 = vmatpush.msra.mxu0 %v100
  %104 = vmatpush.msra.mxu0 %v99
  %105 = vmatpush.msra.mxu0 %v98
  %106 = vmatpush.msra.mxu0 %v97
  %107 = vmatpush.msra.mxu0 %v96
  %108 = vmatpush.msra.mxu0 %v95
  %109 = vmatpush.msra.mxu0 %v94
  %110 = vmatpush.msra.mxu0 %v93
  %111 = vmatpush.msra.mxu0 %v92
  %112 = vmatpush.msra.mxu0 %v91
  %113 = vmatpush.msra.mxu0 %v90
  %114 = vmatpush.msra.mxu0 %v89
  %115 = vmatpush.msra.mxu0 %v88
  %116 = vmatpush.msra.mxu0 %v87
  %117 = vmatpush.msra.mxu0 %v86
  %118 = vmatmul.f32.gmra.mxu0 %v54
  %v119 = vpop.f32.mrf.mxu0
  %v120 = vadd.f32 0.0, %v119
  %121 = vmatmul.f32.gmra.mxu0 %v55
  %v122 = vpop.f32.mrf.mxu0
  %v123 = vadd.f32 0.0, %v122
  %124 = vmatmul.f32.gmra.mxu0 %v56
  %v125 = vpop.f32.mrf.mxu0
  %v126 = vadd.f32 0.0, %v125
  %127 = vmatmul.f32.gmra.mxu0 %v57
  %v128 = vpop.f32.mrf.mxu0
  %v129 = vadd.f32 0.0, %v128
  %130 = vmatmul.f32.gmra.mxu0 %v58
  %v131 = vpop.f32.mrf.mxu0
  %v132 = vadd.f32 0.0, %v131
  %133 = vmatmul.f32.gmra.mxu0 %v59
  %v134 = vpop.f32.mrf.mxu0
  %v135 = vadd.f32 0.0, %v134
  %136 = vmatmul.f32.gmra.mxu0 %v60
  %v137 = vpop.f32.mrf.mxu0
  %v138 = vadd.f32 0.0, %v137
  %139 = vmatmul.f32.gmra.mxu0 %v61
  %v140 = vpop.f32.mrf.mxu0
  %v141 = vadd.f32 0.0, %v140
  %142 = vmatmul.f32.gmra.mxu0 %v62
  %v143 = vpop.f32.mrf.mxu0
  %v144 = vadd.f32 0.0, %v143
  %145 = vmatmul.f32.gmra.mxu0 %v63
  %v146 = vpop.f32.mrf.mxu0
  %v147 = vadd.f32 0.0, %v146
  %148 = vmatmul.f32.gmra.mxu0 %v64
  %v149 = vpop.f32.mrf.mxu0
  %v150 = vadd.f32 0.0, %v149
  %151 = vmatmul.f32.gmra.mxu0 %v65
  %v152 = vpop.f32.mrf.mxu0
  %v153 = vadd.f32 0.0, %v152
  %154 = vmatmul.f32.gmra.mxu0 %v66
  %v155 = vpop.f32.mrf.mxu0
  %v156 = vadd.f32 0.0, %v155
  %157 = vmatmul.f32.gmra.mxu0 %v67
  %v158 = vpop.f32.mrf.mxu0
  %v159 = vadd.f32 0.0, %v158
  %160 = vmatmul.f32.gmra.mxu0 %v68
  %v161 = vpop.f32.mrf.mxu0
  %v162 = vadd.f32 0.0, %v161
  %163 = vmatmul.f32.gmra.mxu0 %v69
  %v164 = vpop.f32.mrf.mxu0
  %v165 = vadd.f32 0.0, %v164
  %166 = vdwg.mxu0
  %v167 = vld [vmem:[%s3] sm:$0xf]
  %v168 = vld [vmem:[%s4] sm:$0x1]
  %170 = vset.pattern.permute.xlu0 0
  %171 = vperm.xlu0 %170, %v70
  %v172 = vpop.permute.xlu0 %171
  %175 = vset.pattern.permute.xlu0 0
  %176 = vperm.xlu0 %175, %v71
  %v177 = vpop.permute.xlu0 %176
  %180 = vset.pattern.permute.xlu0 0
  %181 = vperm.xlu0 %180, %v72
  %v182 = vpop.permute.xlu0 %181
  %185 = vset.pattern.permute.xlu0 0
  %186 = vperm.xlu0 %185, %v73
  %v187 = vpop.permute.xlu0 %186
  %190 = vset.pattern.permute.xlu0 0
  %191 = vperm.xlu0 %190, %v74
  %v192 = vpop.permute.xlu0 %191
  %195 = vset.pattern.permute.xlu0 0
  %196 = vperm.xlu0 %195, %v75
  %v197 = vpop.permute.xlu0 %196
  %200 = vset.pattern.permute.xlu0 0
  %201 = vperm.xlu0 %200, %v76
  %v202 = vpop.permute.xlu0 %201
  %205 = vset.pattern.permute.xlu0 0
  %206 = vperm.xlu0 %205, %v77
  %v207 = vpop.permute.xlu0 %206
  %210 = vset.pattern.permute.xlu0 0
  %211 = vperm.xlu0 %210, %v78
  %v212 = vpop.permute.xlu0 %211
  %215 = vset.pattern.permute.xlu0 0
  %216 = vperm.xlu0 %215, %v79
  %v217 = vpop.permute.xlu0 %216
  %220 = vset.pattern.permute.xlu0 0
  %221 = vperm.xlu0 %220, %v80
  %v222 = vpop.permute.xlu0 %221
  %225 = vset.pattern.permute.xlu0 0
  %226 = vperm.xlu0 %225, %v81
  %v227 = vpop.permute.xlu0 %226
  %230 = vset.pattern.permute.xlu0 0
  %231 = vperm.xlu0 %230, %v82
  %v232 = vpop.permute.xlu0 %231
  %235 = vset.pattern.permute.xlu0 0
  %236 = vperm.xlu0 %235, %v83
  %v237 = vpop.permute.xlu0 %236
  %240 = vset.pattern.permute.xlu0 0
  %241 = vperm.xlu0 %240, %v84
  %v242 = vpop.permute.xlu0 %241
  %245 = vset.pattern.permute.xlu0 0
  %246 = vperm.xlu0 %245, %v85
  %v247 = vpop.permute.xlu0 %246
  %v250 = vperm.slane %v168, 0
  %v252 = vmul.f32 %v172, %v250
  %v253 = vmul.f32 %v177, %v250
  %v254 = vmul.f32 %v182, %v250
  %v255 = vmul.f32 %v187, %v250
  %v256 = vmul.f32 %v192, %v250
  %v257 = vmul.f32 %v197, %v250
  %v258 = vmul.f32 %v202, %v250
  %v259 = vmul.f32 %v207, %v250
  %v260 = vmul.f32 %v212, %v250
  %v261 = vmul.f32 %v217, %v250
  %v262 = vmul.f32 %v222, %v250
  %v263 = vmul.f32 %v227, %v250
  %v264 = vmul.f32 %v232, %v250
  %v265 = vmul.f32 %v237, %v250
  %v266 = vmul.f32 %v242, %v250
  %v267 = vmul.f32 %v247, %v250
  %vm268 = vcmask 31744
  %v270 = vsel %vm268, %v120, 0
  %v273 = vsel %vm268, %v123, 0
  %v276 = vsel %vm268, %v126, 0
  %v279 = vsel %vm268, %v129, 0
  %v282 = vsel %vm268, %v132, 0
  %v285 = vsel %vm268, %v135, 0
  %v288 = vsel %vm268, %v138, 0
  %v291 = vsel %vm268, %v141, 0
  %v294 = vsel %vm268, %v144, 0
  %v297 = vsel %vm268, %v147, 0
  %v300 = vsel %vm268, %v150, 0
  %v303 = vsel %vm268, %v153, 0
  %v306 = vsel %vm268, %v156, 0
  %v309 = vsel %vm268, %v159, 0
  %v312 = vsel %vm268, %v162, 0
  %v315 = vsel %vm268, %v165, 0
  %vm317 = vcmask 1043456
  %v319 = vsel %vm317, %v167, 0
  %321 = vmatpush.msra.mxu0 0.0
  %322 = vmatpush.msra.mxu0 0.0
  %323 = vmatpush.msra.mxu0 0.0
  %324 = vmatpush.msra.mxu0 0.0
  %325 = vmatpush.msra.mxu0 0.0
  %326 = vmatpush.msra.mxu0 0.0
  %327 = vmatpush.msra.mxu0 0.0
  %328 = vmatpush.msra.mxu0 0.0
  %329 = vmatpush.msra.mxu0 0.0
  %330 = vmatpush.msra.mxu0 0.0
  %331 = vmatpush.msra.mxu0 0.0
  %332 = vmatpush.msra.mxu0 0.0
  %333 = vmatpush.msra.mxu0 0.0
  %334 = vmatpush.msra.mxu0 0.0
  %335 = vmatpush.msra.mxu0 0.0
  %336 = vmatpush.msra.mxu0 %v319
  %337 = vmatmul.f32.gmra.mxu0 %v270
  %v338 = vpop.f32.mrf.mxu0
  %v339 = vadd.f32 %v252, %v338
  %340 = vmatmul.f32.gmra.mxu0 %v273
  %v341 = vpop.f32.mrf.mxu0
  %v342 = vadd.f32 %v253, %v341
  %343 = vmatmul.f32.gmra.mxu0 %v276
  %v344 = vpop.f32.mrf.mxu0
  %v345 = vadd.f32 %v254, %v344
  %346 = vmatmul.f32.gmra.mxu0 %v279
  %v347 = vpop.f32.mrf.mxu0
  %v348 = vadd.f32 %v255, %v347
  %349 = vmatmul.f32.gmra.mxu0 %v282
  %v350 = vpop.f32.mrf.mxu0
  %v351 = vadd.f32 %v256, %v350
  %352 = vmatmul.f32.gmra.mxu0 %v285
  %v353 = vpop.f32.mrf.mxu0
  %v354 = vadd.f32 %v257, %v353
  %355 = vmatmul.f32.gmra.mxu0 %v288
  %v356 = vpop.f32.mrf.mxu0
  %v357 = vadd.f32 %v258, %v356
  %358 = vmatmul.f32.gmra.mxu0 %v291
  %v359 = vpop.f32.mrf.mxu0
  %v360 = vadd.f32 %v259, %v359
  %361 = vmatmul.f32.gmra.mxu0 %v294
  %v362 = vpop.f32.mrf.mxu0
  %v363 = vadd.f32 %v260, %v362
  %364 = vmatmul.f32.gmra.mxu0 %v297
  %v365 = vpop.f32.mrf.mxu0
  %v366 = vadd.f32 %v261, %v365
  %367 = vmatmul.f32.gmra.mxu0 %v300
  %v368 = vpop.f32.mrf.mxu0
  %v369 = vadd.f32 %v262, %v368
  %370 = vmatmul.f32.gmra.mxu0 %v303
  %v371 = vpop.f32.mrf.mxu0
  %v372 = vadd.f32 %v263, %v371
  %373 = vmatmul.f32.gmra.mxu0 %v306
  %v374 = vpop.f32.mrf.mxu0
  %v375 = vadd.f32 %v264, %v374
  %376 = vmatmul.f32.gmra.mxu0 %v309
  %v377 = vpop.f32.mrf.mxu0
  %v378 = vadd.f32 %v265, %v377
  %379 = vmatmul.f32.gmra.mxu0 %v312
  %v380 = vpop.f32.mrf.mxu0
  %v381 = vadd.f32 %v266, %v380
  %382 = vmatmul.f32.gmra.mxu0 %v315
  %v383 = vpop.f32.mrf.mxu0
  %v384 = vadd.f32 %v267, %v383
  %385 = vdwg.mxu0
  %v386 = vmax.f32 %v339, 0.0
  %v387 = vmax.f32 %v342, 0.0
  %v388 = vmax.f32 %v345, 0.0
  %v389 = vmax.f32 %v348, 0.0
  %v390 = vmax.f32 %v351, 0.0
  %v391 = vmax.f32 %v354, 0.0
  %v392 = vmax.f32 %v357, 0.0
  %v393 = vmax.f32 %v360, 0.0
  %v394 = vmax.f32 %v363, 0.0
  %v395 = vmax.f32 %v366, 0.0
  %v396 = vmax.f32 %v369, 0.0
  %v397 = vmax.f32 %v372, 0.0
  %v398 = vmax.f32 %v375, 0.0
  %v399 = vmax.f32 %v378, 0.0
  %v400 = vmax.f32 %v381, 0.0
  %v401 = vmax.f32 %v384, 0.0
  %402 = vmatpush.msra.mxu0 %v401
  %403 = vmatpush.msra.mxu0 %v400
  %404 = vmatpush.msra.mxu0 %v399
  %405 = vmatpush.msra.mxu0 %v398
  %406 = vmatpush.msra.mxu0 %v397
  %407 = vmatpush.msra.mxu0 %v396
  %408 = vmatpush.msra.mxu0 %v395
  %409 = vmatpush.msra.mxu0 %v394
  %410 = vmatpush.msra.mxu0 %v393
  %411 = vmatpush.msra.mxu0 %v392
  %412 = vmatpush.msra.mxu0 %v391
  %413 = vmatpush.msra.mxu0 %v390
  %414 = vmatpush.msra.mxu0 %v389
  %415 = vmatpush.msra.mxu0 %v388
  %416 = vmatpush.msra.mxu0 %v387
  %417 = vmatpush.msra.mxu0 %v386
  %418 = vmatmul.f32.gmra.mxu0 %v54
  %v419 = vpop.f32.mrf.mxu0
  %v420 = vadd.f32 0.0, %v419
  %421 = vmatmul.f32.gmra.mxu0 %v55
  %v422 = vpop.f32.mrf.mxu0
  %v423 = vadd.f32 0.0, %v422
  %424 = vmatmul.f32.gmra.mxu0 %v56
  %v425 = vpop.f32.mrf.mxu0
  %v426 = vadd.f32 0.0, %v425
  %427 = vmatmul.f32.gmra.mxu0 %v57
  %v428 = vpop.f32.mrf.mxu0
  %v429 = vadd.f32 0.0, %v428
  %430 = vmatmul.f32.gmra.mxu0 %v58
  %v431 = vpop.f32.mrf.mxu0
  %v432 = vadd.f32 0.0, %v431
  %433 = vmatmul.f32.gmra.mxu0 %v59
  %v434 = vpop.f32.mrf.mxu0
  %v435 = vadd.f32 0.0, %v434
  %436 = vmatmul.f32.gmra.mxu0 %v60
  %v437 = vpop.f32.mrf.mxu0
  %v438 = vadd.f32 0.0, %v437
  %439 = vmatmul.f32.gmra.mxu0 %v61
  %v440 = vpop.f32.mrf.mxu0
  %v441 = vadd.f32 0.0, %v440
  %442 = vmatmul.f32.gmra.mxu0 %v62
  %v443 = vpop.f32.mrf.mxu0
  %v444 = vadd.f32 0.0, %v443
  %445 = vmatmul.f32.gmra.mxu0 %v63
  %v446 = vpop.f32.mrf.mxu0
  %v447 = vadd.f32 0.0, %v446
  %448 = vmatmul.f32.gmra.mxu0 %v64
  %v449 = vpop.f32.mrf.mxu0
  %v450 = vadd.f32 0.0, %v449
  %451 = vmatmul.f32.gmra.mxu0 %v65
  %v452 = vpop.f32.mrf.mxu0
  %v453 = vadd.f32 0.0, %v452
  %454 = vmatmul.f32.gmra.mxu0 %v66
  %v455 = vpop.f32.mrf.mxu0
  %v456 = vadd.f32 0.0, %v455
  %457 = vmatmul.f32.gmra.mxu0 %v67
  %v458 = vpop.f32.mrf.mxu0
  %v459 = vadd.f32 0.0, %v458
  %460 = vmatmul.f32.gmra.mxu0 %v68
  %v461 = vpop.f32.mrf.mxu0
  %v462 = vadd.f32 0.0, %v461
  %463 = vmatmul.f32.gmra.mxu0 %v69
  %v464 = vpop.f32.mrf.mxu0
  %v465 = vadd.f32 0.0, %v464
  %466 = vdwg.mxu0
  %v467 = vld [vmem:[%s5] sm:$0xff]
  %v468 = vld [vmem:[%s5 + $0x8] sm:$0x3]
  %v469 = vld [vmem:[%s6] sm:$0x1]
  %v471 = vperm.slane %v469, 0
  %v473 = vmul.f32 %v172, %v471
  %v474 = vmul.f32 %v177, %v471
  %v475 = vmul.f32 %v182, %v471
  %v476 = vmul.f32 %v187, %v471
  %v477 = vmul.f32 %v192, %v471
  %v478 = vmul.f32 %v197, %v471
  %v479 = vmul.f32 %v202, %v471
  %v480 = vmul.f32 %v207, %v471
  %v481 = vmul.f32 %v212, %v471
  %v482 = vmul.f32 %v217, %v471
  %v483 = vmul.f32 %v222, %v471
  %v484 = vmul.f32 %v227, %v471
  %v485 = vmul.f32 %v232, %v471
  %v486 = vmul.f32 %v237, %v471
  %v487 = vmul.f32 %v242, %v471
  %v488 = vmul.f32 %v247, %v471
  %vm489 = vcmask 80896
  %v491 = vsel %vm489, %v420, 0
  %v494 = vsel %vm489, %v423, 0
  %v497 = vsel %vm489, %v426, 0
  %v500 = vsel %vm489, %v429, 0
  %v503 = vsel %vm489, %v432, 0
  %v506 = vsel %vm489, %v435, 0
  %v509 = vsel %vm489, %v438, 0
  %v512 = vsel %vm489, %v441, 0
  %v515 = vsel %vm489, %v444, 0
  %v518 = vsel %vm489, %v447, 0
  %v521 = vsel %vm489, %v450, 0
  %v524 = vsel %vm489, %v453, 0
  %v527 = vsel %vm489, %v456, 0
  %v530 = vsel %vm489, %v459, 0
  %v533 = vsel %vm489, %v462, 0
  %v536 = vsel %vm489, %v465, 0
  %vm538 = vcmask 1041408
  %v540 = vsel %vm538, %v468, 0
  %542 = vmatpush.msra.mxu0 0.0
  %543 = vmatpush.msra.mxu0 0.0
  %544 = vmatpush.msra.mxu0 0.0
  %545 = vmatpush.msra.mxu0 0.0
  %546 = vmatpush.msra.mxu0 0.0
  %547 = vmatpush.msra.mxu0 0.0
  %548 = vmatpush.msra.mxu0 0.0
  %549 = vmatpush.msra.mxu0 0.0
  %550 = vmatpush.msra.mxu0 0.0
  %551 = vmatpush.msra.mxu0 0.0
  %552 = vmatpush.msra.mxu0 0.0
  %553 = vmatpush.msra.mxu0 0.0
  %554 = vmatpush.msra.mxu0 0.0
  %555 = vmatpush.msra.mxu0 0.0
  %556 = vmatpush.msra.mxu0 %v540
  %557 = vmatpush.msra.mxu0 %v467
  %558 = vmatmul.f32.gmra.mxu0 %v491
  %v559 = vpop.f32.mrf.mxu0
  %v560 = vadd.f32 %v473, %v559
  %561 = vmatmul.f32.gmra.mxu0 %v494
  %v562 = vpop.f32.mrf.mxu0
  %v563 = vadd.f32 %v474, %v562
  %564 = vmatmul.f32.gmra.mxu0 %v497
  %v565 = vpop.f32.mrf.mxu0
  %v566 = vadd.f32 %v475, %v565
  %567 = vmatmul.f32.gmra.mxu0 %v500
  %v568 = vpop.f32.mrf.mxu0
  %v569 = vadd.f32 %v476, %v568
  %570 = vmatmul.f32.gmra.mxu0 %v503
  %v571 = vpop.f32.mrf.mxu0
  %v572 = vadd.f32 %v477, %v571
  %573 = vmatmul.f32.gmra.mxu0 %v506
  %v574 = vpop.f32.mrf.mxu0
  %v575 = vadd.f32 %v478, %v574
  %576 = vmatmul.f32.gmra.mxu0 %v509
  %v577 = vpop.f32.mrf.mxu0
  %v578 = vadd.f32 %v479, %v577
  %579 = vmatmul.f32.gmra.mxu0 %v512
  %v580 = vpop.f32.mrf.mxu0
  %v581 = vadd.f32 %v480, %v580
  %582 = vmatmul.f32.gmra.mxu0 %v515
  %v583 = vpop.f32.mrf.mxu0
  %v584 = vadd.f32 %v481, %v583
  %585 = vmatmul.f32.gmra.mxu0 %v518
  %v586 = vpop.f32.mrf.mxu0
  %v587 = vadd.f32 %v482, %v586
  %588 = vmatmul.f32.gmra.mxu0 %v521
  %v589 = vpop.f32.mrf.mxu0
  %v590 = vadd.f32 %v483, %v589
  %591 = vmatmul.f32.gmra.mxu0 %v524
  %v592 = vpop.f32.mrf.mxu0
  %v593 = vadd.f32 %v484, %v592
  %594 = vmatmul.f32.gmra.mxu0 %v527
  %v595 = vpop.f32.mrf.mxu0
  %v596 = vadd.f32 %v485, %v595
  %597 = vmatmul.f32.gmra.mxu0 %v530
  %v598 = vpop.f32.mrf.mxu0
  %v599 = vadd.f32 %v486, %v598
  %600 = vmatmul.f32.gmra.mxu0 %v533
  %v601 = vpop.f32.mrf.mxu0
  %v602 = vadd.f32 %v487, %v601
  %603 = vmatmul.f32.gmra.mxu0 %v536
  %v604 = vpop.f32.mrf.mxu0
  %v605 = vadd.f32 %v488, %v604
  %606 = vdwg.mxu0
  %607 = vmatpush.msra.mxu0 %v605
  %608 = vmatpush.msra.mxu0 %v602
  %609 = vmatpush.msra.mxu0 %v599
  %610 = vmatpush.msra.mxu0 %v596
  %611 = vmatpush.msra.mxu0 %v593
  %612 = vmatpush.msra.mxu0 %v590
  %613 = vmatpush.msra.mxu0 %v587
  %614 = vmatpush.msra.mxu0 %v584
  %615 = vmatpush.msra.mxu0 %v581
  %616 = vmatpush.msra.mxu0 %v578
  %617 = vmatpush.msra.mxu0 %v575
  %618 = vmatpush.msra.mxu0 %v572
  %619 = vmatpush.msra.mxu0 %v569
  %620 = vmatpush.msra.mxu0 %v566
  %621 = vmatpush.msra.mxu0 %v563
  %622 = vmatpush.msra.mxu0 %v560
  %623 = vmatmul.f32.gmra.mxu0 %v54
  %v624 = vpop.f32.mrf.mxu0
  %v625 = vadd.f32 0.0, %v624
  %626 = vmatmul.f32.gmra.mxu0 %v55
  %v627 = vpop.f32.mrf.mxu0
  %v628 = vadd.f32 0.0, %v627
  %629 = vmatmul.f32.gmra.mxu0 %v56
  %v630 = vpop.f32.mrf.mxu0
  %v631 = vadd.f32 0.0, %v630
  %632 = vmatmul.f32.gmra.mxu0 %v57
  %v633 = vpop.f32.mrf.mxu0
  %v634 = vadd.f32 0.0, %v633
  %635 = vmatmul.f32.gmra.mxu0 %v58
  %v636 = vpop.f32.mrf.mxu0
  %v637 = vadd.f32 0.0, %v636
  %638 = vmatmul.f32.gmra.mxu0 %v59
  %v639 = vpop.f32.mrf.mxu0
  %v640 = vadd.f32 0.0, %v639
  %641 = vmatmul.f32.gmra.mxu0 %v60
  %v642 = vpop.f32.mrf.mxu0
  %v643 = vadd.f32 0.0, %v642
  %644 = vmatmul.f32.gmra.mxu0 %v61
  %v645 = vpop.f32.mrf.mxu0
  %v646 = vadd.f32 0.0, %v645
  %647 = vmatmul.f32.gmra.mxu0 %v62
  %v648 = vpop.f32.mrf.mxu0
  %v649 = vadd.f32 0.0, %v648
  %650 = vmatmul.f32.gmra.mxu0 %v63
  %v651 = vpop.f32.mrf.mxu0
  %v652 = vadd.f32 0.0, %v651
  %653 = vmatmul.f32.gmra.mxu0 %v64
  %v654 = vpop.f32.mrf.mxu0
  %v655 = vadd.f32 0.0, %v654
  %656 = vmatmul.f32.gmra.mxu0 %v65
  %v657 = vpop.f32.mrf.mxu0
  %v658 = vadd.f32 0.0, %v657
  %659 = vmatmul.f32.gmra.mxu0 %v66
  %v660 = vpop.f32.mrf.mxu0
  %v661 = vadd.f32 0.0, %v660
  %662 = vmatmul.f32.gmra.mxu0 %v67
  %v663 = vpop.f32.mrf.mxu0
  %v664 = vadd.f32 0.0, %v663
  %665 = vmatmul.f32.gmra.mxu0 %v68
  %v666 = vpop.f32.mrf.mxu0
  %v667 = vadd.f32 0.0, %v666
  %668 = vmatmul.f32.gmra.mxu0 %v69
  %v669 = vpop.f32.mrf.mxu0
  %v670 = vadd.f32 0.0, %v669
  %671 = vdwg.mxu0
  %v672 = vld [vmem:[%s7] sm:$0xff]
  %v673 = vld [vmem:[%s7 + $0x8] sm:$0x3]
  %v674 = vld [vmem:[%s8] sm:$0x1]
  %v676 = vperm.slane %v674, 0
  %v678 = vmul.f32 %v172, %v676
  %v679 = vmul.f32 %v177, %v676
  %v680 = vmul.f32 %v182, %v676
  %v681 = vmul.f32 %v187, %v676
  %v682 = vmul.f32 %v192, %v676
  %v683 = vmul.f32 %v197, %v676
  %v684 = vmul.f32 %v202, %v676
  %v685 = vmul.f32 %v207, %v676
  %v686 = vmul.f32 %v212, %v676
  %v687 = vmul.f32 %v217, %v676
  %v688 = vmul.f32 %v222, %v676
  %v689 = vmul.f32 %v227, %v676
  %v690 = vmul.f32 %v232, %v676
  %v691 = vmul.f32 %v237, %v676
  %v692 = vmul.f32 %v242, %v676
  %v693 = vmul.f32 %v247, %v676
  %v695 = vsel %vm489, %v625, 0
  %v698 = vsel %vm489, %v628, 0
  %v701 = vsel %vm489, %v631, 0
  %v704 = vsel %vm489, %v634, 0
  %v707 = vsel %vm489, %v637, 0
  %v710 = vsel %vm489, %v640, 0
  %v713 = vsel %vm489, %v643, 0
  %v716 = vsel %vm489, %v646, 0
  %v719 = vsel %vm489, %v649, 0
  %v722 = vsel %vm489, %v652, 0
  %v725 = vsel %vm489, %v655, 0
  %v728 = vsel %vm489, %v658, 0
  %v731 = vsel %vm489, %v661, 0
  %v734 = vsel %vm489, %v664, 0
  %v737 = vsel %vm489, %v667, 0
  %v740 = vsel %vm489, %v670, 0
  %v743 = vsel %vm538, %v673, 0
  %745 = vmatpush.msra.mxu0 0.0
  %746 = vmatpush.msra.mxu0 0.0
  %747 = vmatpush.msra.mxu0 0.0
  %748 = vmatpush.msra.mxu0 0.0
  %749 = vmatpush.msra.mxu0 0.0
  %750 = vmatpush.msra.mxu0 0.0
  %751 = vmatpush.msra.mxu0 0.0
  %752 = vmatpush.msra.mxu0 0.0
  %753 = vmatpush.msra.mxu0 0.0
  %754 = vmatpush.msra.mxu0 0.0
  %755 = vmatpush.msra.mxu0 0.0
  %756 = vmatpush.msra.mxu0 0.0
  %757 = vmatpush.msra.mxu0 0.0
  %758 = vmatpush.msra.mxu0 0.0
  %759 = vmatpush.msra.mxu0 %v743
  %760 = vmatpush.msra.mxu0 %v672
  %761 = vmatmul.f32.gmra.mxu0 %v695
  %v762 = vpop.f32.mrf.mxu0
  %v763 = vadd.f32 %v678, %v762
  %764 = vmatmul.f32.gmra.mxu0 %v698
  %v765 = vpop.f32.mrf.mxu0
  %v766 = vadd.f32 %v679, %v765
  %767 = vmatmul.f32.gmra.mxu0 %v701
  %v768 = vpop.f32.mrf.mxu0
  %v769 = vadd.f32 %v680, %v768
  %770 = vmatmul.f32.gmra.mxu0 %v704
  %v771 = vpop.f32.mrf.mxu0
  %v772 = vadd.f32 %v681, %v771
  %773 = vmatmul.f32.gmra.mxu0 %v707
  %v774 = vpop.f32.mrf.mxu0
  %v775 = vadd.f32 %v682, %v774
  %776 = vmatmul.f32.gmra.mxu0 %v710
  %v777 = vpop.f32.mrf.mxu0
  %v778 = vadd.f32 %v683, %v777
  %779 = vmatmul.f32.gmra.mxu0 %v713
  %v780 = vpop.f32.mrf.mxu0
  %v781 = vadd.f32 %v684, %v780
  %782 = vmatmul.f32.gmra.mxu0 %v716
  %v783 = vpop.f32.mrf.mxu0
  %v784 = vadd.f32 %v685, %v783
  %785 = vmatmul.f32.gmra.mxu0 %v719
  %v786 = vpop.f32.mrf.mxu0
  %v787 = vadd.f32 %v686, %v786
  %788 = vmatmul.f32.gmra.mxu0 %v722
  %v789 = vpop.f32.mrf.mxu0
  %v790 = vadd.f32 %v687, %v789
  %791 = vmatmul.f32.gmra.mxu0 %v725
  %v792 = vpop.f32.mrf.mxu0
  %v793 = vadd.f32 %v688, %v792
  %794 = vmatmul.f32.gmra.mxu0 %v728
  %v795 = vpop.f32.mrf.mxu0
  %v796 = vadd.f32 %v689, %v795
  %797 = vmatmul.f32.gmra.mxu0 %v731
  %v798 = vpop.f32.mrf.mxu0
  %v799 = vadd.f32 %v690, %v798
  %800 = vmatmul.f32.gmra.mxu0 %v734
  %v801 = vpop.f32.mrf.mxu0
  %v802 = vadd.f32 %v691, %v801
  %803 = vmatmul.f32.gmra.mxu0 %v737
  %v804 = vpop.f32.mrf.mxu0
  %v805 = vadd.f32 %v692, %v804
  %806 = vmatmul.f32.gmra.mxu0 %v740
  %v807 = vpop.f32.mrf.mxu0
  %v808 = vadd.f32 %v693, %v807
  %809 = vdwg.mxu0
  %vm810 = vcmp.gt.f32.partialorder %v70, 0.0
  %vm811 = vcmp.gt.f32.partialorder %v71, 0.0
  %vm812 = vcmp.gt.f32.partialorder %v72, 0.0
  %vm813 = vcmp.gt.f32.partialorder %v73, 0.0
  %vm814 = vcmp.gt.f32.partialorder %v74, 0.0
  %vm815 = vcmp.gt.f32.partialorder %v75, 0.0
  %vm816 = vcmp.gt.f32.partialorder %v76, 0.0
  %vm817 = vcmp.gt.f32.partialorder %v77, 0.0
  %vm818 = vcmp.gt.f32.partialorder %v78, 0.0
  %vm819 = vcmp.gt.f32.partialorder %v79, 0.0
  %vm820 = vcmp.gt.f32.partialorder %v80, 0.0
  %vm821 = vcmp.gt.f32.partialorder %v81, 0.0
  %vm822 = vcmp.gt.f32.partialorder %v82, 0.0
  %vm823 = vcmp.gt.f32.partialorder %v83, 0.0
  %vm824 = vcmp.gt.f32.partialorder %v84, 0.0
  %vm825 = vcmp.gt.f32.partialorder %v85, 0.0
  %v826 = vmax.f32 %v70, 1.0
  %v827 = vmax.f32 %v71, 1.0
  %v828 = vmax.f32 %v72, 1.0
  %v829 = vmax.f32 %v73, 1.0
  %v830 = vmax.f32 %v74, 1.0
  %v831 = vmax.f32 %v75, 1.0
  %v832 = vmax.f32 %v76, 1.0
  %v833 = vmax.f32 %v77, 1.0
  %v834 = vmax.f32 %v78, 1.0
  %v835 = vmax.f32 %v79, 1.0
  %v836 = vmax.f32 %v80, 1.0
  %v837 = vmax.f32 %v81, 1.0
  %v838 = vmax.f32 %v82, 1.0
  %v839 = vmax.f32 %v83, 1.0
  %v840 = vmax.f32 %v84, 1.0
  %v841 = vmax.f32 %v85, 1.0
  %v842 = vrcp.pop %v826
  %v843 = vrcp.pop %v827
  %v844 = vrcp.pop %v828
  %v845 = vrcp.pop %v829
  %v846 = vrcp.pop %v830
  %v847 = vrcp.pop %v831
  %v848 = vrcp.pop %v832
  %v849 = vrcp.pop %v833
  %v850 = vrcp.pop %v834
  %v851 = vrcp.pop %v835
  %v852 = vrcp.pop %v836
  %v853 = vrcp.pop %v837
  %v854 = vrcp.pop %v838
  %v855 = vrcp.pop %v839
  %v856 = vrcp.pop %v840
  %v857 = vrcp.pop %v841
  %v858 = vsel %vm810, %v842, 0.0
  %v859 = vsel %vm811, %v843, 0.0
  %v860 = vsel %vm812, %v844, 0.0
  %v861 = vsel %vm813, %v845, 0.0
  %v862 = vsel %vm814, %v846, 0.0
  %v863 = vsel %vm815, %v847, 0.0
  %v864 = vsel %vm816, %v848, 0.0
  %v865 = vsel %vm817, %v849, 0.0
  %v866 = vsel %vm818, %v850, 0.0
  %v867 = vsel %vm819, %v851, 0.0
  %v868 = vsel %vm820, %v852, 0.0
  %v869 = vsel %vm821, %v853, 0.0
  %v870 = vsel %vm822, %v854, 0.0
  %v871 = vsel %vm823, %v855, 0.0
  %v872 = vsel %vm824, %v856, 0.0
  %v873 = vsel %vm825, %v857, 0.0
  %875 = vset.pattern.permute.xlu0 0
  %876 = vperm.xlu0 %875, %v858
  %v877 = vpop.permute.xlu0 %876
  %880 = vset.pattern.permute.xlu0 0
  %881 = vperm.xlu0 %880, %v859
  %v882 = vpop.permute.xlu0 %881
  %885 = vset.pattern.permute.xlu0 0
  %886 = vperm.xlu0 %885, %v860
  %v887 = vpop.permute.xlu0 %886
  %890 = vset.pattern.permute.xlu0 0
  %891 = vperm.xlu0 %890, %v861
  %v892 = vpop.permute.xlu0 %891
  %895 = vset.pattern.permute.xlu0 0
  %896 = vperm.xlu0 %895, %v862
  %v897 = vpop.permute.xlu0 %896
  %900 = vset.pattern.permute.xlu0 0
  %901 = vperm.xlu0 %900, %v863
  %v902 = vpop.permute.xlu0 %901
  %905 = vset.pattern.permute.xlu0 0
  %906 = vperm.xlu0 %905, %v864
  %v907 = vpop.permute.xlu0 %906
  %910 = vset.pattern.permute.xlu0 0
  %911 = vperm.xlu0 %910, %v865
  %v912 = vpop.permute.xlu0 %911
  %915 = vset.pattern.permute.xlu0 0
  %916 = vperm.xlu0 %915, %v866
  %v917 = vpop.permute.xlu0 %916
  %920 = vset.pattern.permute.xlu0 0
  %921 = vperm.xlu0 %920, %v867
  %v922 = vpop.permute.xlu0 %921
  %925 = vset.pattern.permute.xlu0 0
  %926 = vperm.xlu0 %925, %v868
  %v927 = vpop.permute.xlu0 %926
  %930 = vset.pattern.permute.xlu0 0
  %931 = vperm.xlu0 %930, %v869
  %v932 = vpop.permute.xlu0 %931
  %935 = vset.pattern.permute.xlu0 0
  %936 = vperm.xlu0 %935, %v870
  %v937 = vpop.permute.xlu0 %936
  %940 = vset.pattern.permute.xlu0 0
  %941 = vperm.xlu0 %940, %v871
  %v942 = vpop.permute.xlu0 %941
  %945 = vset.pattern.permute.xlu0 0
  %946 = vperm.xlu0 %945, %v872
  %v947 = vpop.permute.xlu0 %946
  %950 = vset.pattern.permute.xlu0 0
  %951 = vperm.xlu0 %950, %v873
  %v952 = vpop.permute.xlu0 %951
  %v954 = vmul.f32 %v877, %v763
  %v955 = vmul.f32 %v882, %v766
  %v956 = vmul.f32 %v887, %v769
  %v957 = vmul.f32 %v892, %v772
  %v958 = vmul.f32 %v897, %v775
  %v959 = vmul.f32 %v902, %v778
  %v960 = vmul.f32 %v907, %v781
  %v961 = vmul.f32 %v912, %v784
  %v962 = vmul.f32 %v917, %v787
  %v963 = vmul.f32 %v922, %v790
  %v964 = vmul.f32 %v927, %v793
  %v965 = vmul.f32 %v932, %v796
  %v966 = vmul.f32 %v937, %v799
  %v967 = vmul.f32 %v942, %v802
  %v968 = vmul.f32 %v947, %v805
  %v969 = vmul.f32 %v952, %v808
  %v970 = vmax.f32 %v954, 0.0
  %v971 = vmax.f32 %v955, 0.0
  %v972 = vmax.f32 %v956, 0.0
  %v973 = vmax.f32 %v957, 0.0
  %v974 = vmax.f32 %v958, 0.0
  %v975 = vmax.f32 %v959, 0.0
  %v976 = vmax.f32 %v960, 0.0
  %v977 = vmax.f32 %v961, 0.0
  %v978 = vmax.f32 %v962, 0.0
  %v979 = vmax.f32 %v963, 0.0
  %v980 = vmax.f32 %v964, 0.0
  %v981 = vmax.f32 %v965, 0.0
  %v982 = vmax.f32 %v966, 0.0
  %v983 = vmax.f32 %v967, 0.0
  %v984 = vmax.f32 %v968, 0.0
  %v985 = vmax.f32 %v969, 0.0
  %v986 = vld [vmem:[%s9] sm:$0xff]
  %v987 = vld [vmem:[%s9 + $0x8] sm:$0x3]
  %v988 = vld [vmem:[%s10] sm:$0x1]
  %v990 = vperm.slane %v988, 0
  %v993 = vsel %vm489, %v970, 0
  %v996 = vsel %vm489, %v971, 0
  %v999 = vsel %vm489, %v972, 0
  %v1002 = vsel %vm489, %v973, 0
  %v1005 = vsel %vm489, %v974, 0
  %v1008 = vsel %vm489, %v975, 0
  %v1011 = vsel %vm489, %v976, 0
  %v1014 = vsel %vm489, %v977, 0
  %v1017 = vsel %vm489, %v978, 0
  %v1020 = vsel %vm489, %v979, 0
  %v1023 = vsel %vm489, %v980, 0
  %v1026 = vsel %vm489, %v981, 0
  %v1029 = vsel %vm489, %v982, 0
  %v1032 = vsel %vm489, %v983, 0
  %v1035 = vsel %vm489, %v984, 0
  %v1038 = vsel %vm489, %v985, 0
  %v1041 = vsel %vm538, %v987, 0
  %1043 = vmatpush.msra.mxu0 0.0
  %1044 = vmatpush.msra.mxu0 0.0
  %1045 = vmatpush.msra.mxu0 0.0
  %1046 = vmatpush.msra.mxu0 0.0
  %1047 = vmatpush.msra.mxu0 0.0
  %1048 = vmatpush.msra.mxu0 0.0
  %1049 = vmatpush.msra.mxu0 0.0
  %1050 = vmatpush.msra.mxu0 0.0
  %1051 = vmatpush.msra.mxu0 0.0
  %1052 = vmatpush.msra.mxu0 0.0
  %1053 = vmatpush.msra.mxu0 0.0
  %1054 = vmatpush.msra.mxu0 0.0
  %1055 = vmatpush.msra.mxu0 0.0
  %1056 = vmatpush.msra.mxu0 0.0
  %1057 = vmatpush.msra.mxu0 %v1041
  %1058 = vmatpush.msra.mxu0 %v986
  %1059 = vmatmul.f32.gmra.mxu0 %v993
  %v1060 = vpop.f32.mrf.mxu0
  %v1061 = vadd.f32 %v990, %v1060
  %1062 = vmatmul.f32.gmra.mxu0 %v996
  %v1063 = vpop.f32.mrf.mxu0
  %v1064 = vadd.f32 %v990, %v1063
  %1065 = vmatmul.f32.gmra.mxu0 %v999
  %v1066 = vpop.f32.mrf.mxu0
  %v1067 = vadd.f32 %v990, %v1066
  %1068 = vmatmul.f32.gmra.mxu0 %v1002
  %v1069 = vpop.f32.mrf.mxu0
  %v1070 = vadd.f32 %v990, %v1069
  %1071 = vmatmul.f32.gmra.mxu0 %v1005
  %v1072 = vpop.f32.mrf.mxu0
  %v1073 = vadd.f32 %v990, %v1072
  %1074 = vmatmul.f32.gmra.mxu0 %v1008
  %v1075 = vpop.f32.mrf.mxu0
  %v1076 = vadd.f32 %v990, %v1075
  %1077 = vmatmul.f32.gmra.mxu0 %v1011
  %v1078 = vpop.f32.mrf.mxu0
  %v1079 = vadd.f32 %v990, %v1078
  %1080 = vmatmul.f32.gmra.mxu0 %v1014
  %v1081 = vpop.f32.mrf.mxu0
  %v1082 = vadd.f32 %v990, %v1081
  %1083 = vmatmul.f32.gmra.mxu0 %v1017
  %v1084 = vpop.f32.mrf.mxu0
  %v1085 = vadd.f32 %v990, %v1084
  %1086 = vmatmul.f32.gmra.mxu0 %v1020
  %v1087 = vpop.f32.mrf.mxu0
  %v1088 = vadd.f32 %v990, %v1087
  %1089 = vmatmul.f32.gmra.mxu0 %v1023
  %v1090 = vpop.f32.mrf.mxu0
  %v1091 = vadd.f32 %v990, %v1090
  %1092 = vmatmul.f32.gmra.mxu0 %v1026
  %v1093 = vpop.f32.mrf.mxu0
  %v1094 = vadd.f32 %v990, %v1093
  %1095 = vmatmul.f32.gmra.mxu0 %v1029
  %v1096 = vpop.f32.mrf.mxu0
  %v1097 = vadd.f32 %v990, %v1096
  %1098 = vmatmul.f32.gmra.mxu0 %v1032
  %v1099 = vpop.f32.mrf.mxu0
  %v1100 = vadd.f32 %v990, %v1099
  %1101 = vmatmul.f32.gmra.mxu0 %v1035
  %v1102 = vpop.f32.mrf.mxu0
  %v1103 = vadd.f32 %v990, %v1102
  %1104 = vmatmul.f32.gmra.mxu0 %v1038
  %v1105 = vpop.f32.mrf.mxu0
  %v1106 = vadd.f32 %v990, %v1105
  %1107 = vdwg.mxu0
  %vm1108 = vcmask 23552
  %v1109 = vsel %vm1108, %v1061, -inf
  %1110 = vmax.xlane.f32.xlu0 %v1109
  %v1111 = vpop.xlane.xlu0 %1110
  %v1112 = vsel %vm1108, %v1064, -inf
  %1113 = vmax.xlane.f32.xlu0 %v1112
  %v1114 = vpop.xlane.xlu0 %1113
  %v1115 = vsel %vm1108, %v1067, -inf
  %1116 = vmax.xlane.f32.xlu0 %v1115
  %v1117 = vpop.xlane.xlu0 %1116
  %v1118 = vsel %vm1108, %v1070, -inf
  %1119 = vmax.xlane.f32.xlu0 %v1118
  %v1120 = vpop.xlane.xlu0 %1119
  %v1121 = vsel %vm1108, %v1073, -inf
  %1122 = vmax.xlane.f32.xlu0 %v1121
  %v1123 = vpop.xlane.xlu0 %1122
  %v1124 = vsel %vm1108, %v1076, -inf
  %1125 = vmax.xlane.f32.xlu0 %v1124
  %v1126 = vpop.xlane.xlu0 %1125
  %v1127 = vsel %vm1108, %v1079, -inf
  %1128 = vmax.xlane.f32.xlu0 %v1127
  %v1129 = vpop.xlane.xlu0 %1128
  %v1130 = vsel %vm1108, %v1082, -inf
  %1131 = vmax.xlane.f32.xlu0 %v1130
  %v1132 = vpop.xlane.xlu0 %1131
  %v1133 = vsel %vm1108, %v1085, -inf
  %1134 = vmax.xlane.f32.xlu0 %v1133
  %v1135 = vpop.xlane.xlu0 %1134
  %v1136 = vsel %vm1108, %v1088, -inf
  %1137 = vmax.xlane.f32.xlu0 %v1136
  %v1138 = vpop.xlane.xlu0 %1137
  %v1139 = vsel %vm1108, %v1091, -inf
  %1140 = vmax.xlane.f32.xlu0 %v1139
  %v1141 = vpop.xlane.xlu0 %1140
  %v1142 = vsel %vm1108, %v1094, -inf
  %1143 = vmax.xlane.f32.xlu0 %v1142
  %v1144 = vpop.xlane.xlu0 %1143
  %v1145 = vsel %vm1108, %v1097, -inf
  %1146 = vmax.xlane.f32.xlu0 %v1145
  %v1147 = vpop.xlane.xlu0 %1146
  %v1148 = vsel %vm1108, %v1100, -inf
  %1149 = vmax.xlane.f32.xlu0 %v1148
  %v1150 = vpop.xlane.xlu0 %1149
  %v1151 = vsel %vm1108, %v1103, -inf
  %1152 = vmax.xlane.f32.xlu0 %v1151
  %v1153 = vpop.xlane.xlu0 %1152
  %v1154 = vsel %vm1108, %v1106, -inf
  %1155 = vmax.xlane.f32.xlu0 %v1154
  %v1156 = vpop.xlane.xlu0 %1155
  %v1157 = vsub.f32 %v1061, %v1111
  %v1158 = vsub.f32 %v1064, %v1114
  %v1159 = vsub.f32 %v1067, %v1117
  %v1160 = vsub.f32 %v1070, %v1120
  %v1161 = vsub.f32 %v1073, %v1123
  %v1162 = vsub.f32 %v1076, %v1126
  %v1163 = vsub.f32 %v1079, %v1129
  %v1164 = vsub.f32 %v1082, %v1132
  %v1165 = vsub.f32 %v1085, %v1135
  %v1166 = vsub.f32 %v1088, %v1138
  %v1167 = vsub.f32 %v1091, %v1141
  %v1168 = vsub.f32 %v1094, %v1144
  %v1169 = vsub.f32 %v1097, %v1147
  %v1170 = vsub.f32 %v1100, %v1150
  %v1171 = vsub.f32 %v1103, %v1153
  %v1172 = vsub.f32 %v1106, %v1156
  %v1173 = vmul.f32 %v1157, 1.442695
  %v1174 = vpow.pop %v1173
  %v1175 = vmul.f32 %v1158, 1.442695
  %v1176 = vpow.pop %v1175
  %v1177 = vmul.f32 %v1159, 1.442695
  %v1178 = vpow.pop %v1177
  %v1179 = vmul.f32 %v1160, 1.442695
  %v1180 = vpow.pop %v1179
  %v1181 = vmul.f32 %v1161, 1.442695
  %v1182 = vpow.pop %v1181
  %v1183 = vmul.f32 %v1162, 1.442695
  %v1184 = vpow.pop %v1183
  %v1185 = vmul.f32 %v1163, 1.442695
  %v1186 = vpow.pop %v1185
  %v1187 = vmul.f32 %v1164, 1.442695
  %v1188 = vpow.pop %v1187
  %v1189 = vmul.f32 %v1165, 1.442695
  %v1190 = vpow.pop %v1189
  %v1191 = vmul.f32 %v1166, 1.442695
  %v1192 = vpow.pop %v1191
  %v1193 = vmul.f32 %v1167, 1.442695
  %v1194 = vpow.pop %v1193
  %v1195 = vmul.f32 %v1168, 1.442695
  %v1196 = vpow.pop %v1195
  %v1197 = vmul.f32 %v1169, 1.442695
  %v1198 = vpow.pop %v1197
  %v1199 = vmul.f32 %v1170, 1.442695
  %v1200 = vpow.pop %v1199
  %v1201 = vmul.f32 %v1171, 1.442695
  %v1202 = vpow.pop %v1201
  %v1203 = vmul.f32 %v1172, 1.442695
  %v1204 = vpow.pop %v1203
  %v1205 = vsel %vm1108, %v1174, 0.0
  %1206 = vadd.xlane.f32.xlu0 %v1205
  %v1207 = vpop.xlane.xlu0 %1206
  %v1208 = vsel %vm1108, %v1176, 0.0
  %1209 = vadd.xlane.f32.xlu0 %v1208
  %v1210 = vpop.xlane.xlu0 %1209
  %v1211 = vsel %vm1108, %v1178, 0.0
  %1212 = vadd.xlane.f32.xlu0 %v1211
  %v1213 = vpop.xlane.xlu0 %1212
  %v1214 = vsel %vm1108, %v1180, 0.0
  %1215 = vadd.xlane.f32.xlu0 %v1214
  %v1216 = vpop.xlane.xlu0 %1215
  %v1217 = vsel %vm1108, %v1182, 0.0
  %1218 = vadd.xlane.f32.xlu0 %v1217
  %v1219 = vpop.xlane.xlu0 %1218
  %v1220 = vsel %vm1108, %v1184, 0.0
  %1221 = vadd.xlane.f32.xlu0 %v1220
  %v1222 = vpop.xlane.xlu0 %1221
  %v1223 = vsel %vm1108, %v1186, 0.0
  %1224 = vadd.xlane.f32.xlu0 %v1223
  %v1225 = vpop.xlane.xlu0 %1224
  %v1226 = vsel %vm1108, %v1188, 0.0
  %1227 = vadd.xlane.f32.xlu0 %v1226
  %v1228 = vpop.xlane.xlu0 %1227
  %v1229 = vsel %vm1108, %v1190, 0.0
  %1230 = vadd.xlane.f32.xlu0 %v1229
  %v1231 = vpop.xlane.xlu0 %1230
  %v1232 = vsel %vm1108, %v1192, 0.0
  %1233 = vadd.xlane.f32.xlu0 %v1232
  %v1234 = vpop.xlane.xlu0 %1233
  %v1235 = vsel %vm1108, %v1194, 0.0
  %1236 = vadd.xlane.f32.xlu0 %v1235
  %v1237 = vpop.xlane.xlu0 %1236
  %v1238 = vsel %vm1108, %v1196, 0.0
  %1239 = vadd.xlane.f32.xlu0 %v1238
  %v1240 = vpop.xlane.xlu0 %1239
  %v1241 = vsel %vm1108, %v1198, 0.0
  %1242 = vadd.xlane.f32.xlu0 %v1241
  %v1243 = vpop.xlane.xlu0 %1242
  %v1244 = vsel %vm1108, %v1200, 0.0
  %1245 = vadd.xlane.f32.xlu0 %v1244
  %v1246 = vpop.xlane.xlu0 %1245
  %v1247 = vsel %vm1108, %v1202, 0.0
  %1248 = vadd.xlane.f32.xlu0 %v1247
  %v1249 = vpop.xlane.xlu0 %1248
  %v1250 = vsel %vm1108, %v1204, 0.0
  %1251 = vadd.xlane.f32.xlu0 %v1250
  %v1252 = vpop.xlane.xlu0 %1251
  %v1253 = vrcp.pop %v1207
  %v1254 = vrcp.pop %v1210
  %v1255 = vrcp.pop %v1213
  %v1256 = vrcp.pop %v1216
  %v1257 = vrcp.pop %v1219
  %v1258 = vrcp.pop %v1222
  %v1259 = vrcp.pop %v1225
  %v1260 = vrcp.pop %v1228
  %v1261 = vrcp.pop %v1231
  %v1262 = vrcp.pop %v1234
  %v1263 = vrcp.pop %v1237
  %v1264 = vrcp.pop %v1240
  %v1265 = vrcp.pop %v1243
  %v1266 = vrcp.pop %v1246
  %v1267 = vrcp.pop %v1249
  %v1268 = vrcp.pop %v1252
  %v1269 = vmul.f32 %v1174, %v1253
  %v1270 = vmul.f32 %v1176, %v1254
  %v1271 = vmul.f32 %v1178, %v1255
  %v1272 = vmul.f32 %v1180, %v1256
  %v1273 = vmul.f32 %v1182, %v1257
  %v1274 = vmul.f32 %v1184, %v1258
  %v1275 = vmul.f32 %v1186, %v1259
  %v1276 = vmul.f32 %v1188, %v1260
  %v1277 = vmul.f32 %v1190, %v1261
  %v1278 = vmul.f32 %v1192, %v1262
  %v1279 = vmul.f32 %v1194, %v1263
  %v1280 = vmul.f32 %v1196, %v1264
  %v1281 = vmul.f32 %v1198, %v1265
  %v1282 = vmul.f32 %v1200, %v1266
  %v1283 = vmul.f32 %v1202, %v1267
  %v1284 = vmul.f32 %v1204, %v1268
  %1285 = vst.msk [vmem:[%s11] sm:$0xff] %vm1108, %v1269
  %1286 = vst.msk [vmem:[%s11 + $0x8] sm:$0xff] %vm1108, %v1270
  %1287 = vst.msk [vmem:[%s11 + $0x10] sm:$0xff] %vm1108, %v1271
  %1288 = vst.msk [vmem:[%s11 + $0x18] sm:$0xff] %vm1108, %v1272
  %1289 = vst.msk [vmem:[%s11 + $0x20] sm:$0xff] %vm1108, %v1273
  %1290 = vst.msk [vmem:[%s11 + $0x28] sm:$0xff] %vm1108, %v1274
  %1291 = vst.msk [vmem:[%s11 + $0x30] sm:$0xff] %vm1108, %v1275
  %1292 = vst.msk [vmem:[%s11 + $0x38] sm:$0xff] %vm1108, %v1276
  %1293 = vst.msk [vmem:[%s11 + $0x40] sm:$0xff] %vm1108, %v1277
  %1294 = vst.msk [vmem:[%s11 + $0x48] sm:$0xff] %vm1108, %v1278
  %1295 = vst.msk [vmem:[%s11 + $0x50] sm:$0xff] %vm1108, %v1279
  %1296 = vst.msk [vmem:[%s11 + $0x58] sm:$0xff] %vm1108, %v1280
  %1297 = vst.msk [vmem:[%s11 + $0x60] sm:$0xff] %vm1108, %v1281
  %1298 = vst.msk [vmem:[%s11 + $0x68] sm:$0xff] %vm1108, %v1282
  %1299 = vst.msk [vmem:[%s11 + $0x70] sm:$0xff] %vm1108, %v1283
  %1300 = vst.msk [vmem:[%s11 + $0x78] sm:$0xff] %vm1108, %v1284
  // Predicated region
  $region46: #{tpu_custom_call.1} parent=0 // pred_check
    _
  $region47: #{tpu_custom_call.1} parent=0 // pred_check_branch
    %1302 = sbr.rel (0) target = $region49
  $region48: #{tpu_custom_call.1} parent=0 // pred_region
    _
  $region49: #{tpu_custom_call.1} parent=0 // pred_fallthru
    _
  // Predicated region
  $region50: #{tpu_custom_call.1} parent=0 // pred_check
    _
  $region51: #{tpu_custom_call.1} parent=0 // pred_check_branch
    %1304 = sbr.rel (0) target = $region53
  $region52: #{tpu_custom_call.1} parent=0 // pred_region
    _
  $region53: #{tpu_custom_call.1} parent=0 // pred_fallthru
    _

</llo_original>
